<compile_context>
chip_gen: v5e
topology: v5e:2x2
jax: 0.10.0
libtpu: 0.0.40
codegen_flags: <defaults>
</compile_context>

<pallas_src>
import functools

import jax
import jax.numpy as jnp
from jax.experimental import pallas as pl
from jax.experimental.pallas import tpu as pltpu


def _round_up(x, m):
    return ((x + m - 1) // m) * m


def _seg_head_kernel(feat_ref, w_ref, b_ref, out_ref):
    # feat_ref: (tmr, Cp) native feat dtype   w_ref: (Cp, Kp) compute dtype
    # b_ref:    (1, Kp)   f32                 out_ref: (tmr, Kp) out dtype
    # Cast inside the kernel (free VPU work) instead of a wrapper HBM pass.
    x = feat_ref[...].astype(w_ref.dtype)
    acc = jnp.dot(x, w_ref[...], preferred_element_type=jnp.float32)
    out_ref[...] = (acc + b_ref[...]).astype(out_ref.dtype)


@functools.partial(jax.jit, static_argnames=("tm", "compute_dtype", "out_dtype"))
def seg_head_pallas(feat, weight, bias, *, tm=16384,
                    compute_dtype=jnp.bfloat16, out_dtype=jnp.float32):
    """seg_logits = feat @ weight + bias  (nn.Linear with weight pre-transposed).

    feat:   (N, C)  any float dtype (read natively, cast in-kernel)
    weight: (C, K)  (== torch Linear.weight.T)
    bias:   (K,)
    returns (N, K) in out_dtype (default f32 logits).
    """
    N, C = feat.shape
    Cw, K = weight.shape
    assert C == Cw
    if N == 0 or K == 0:
        return jnp.zeros((N, K), out_dtype)

    # Lane-dense packing factor: fold R points into one packed row so the
    # packed output width is exactly 128 lanes (unmasked, dense writeback).
    R = 128 // K if (0 < K <= 128 and 128 % K == 0) else 1
    Cp, Kp = R * C, R * K

    # Pad N only up to a multiple of R (<= R-1 rows, only when needed).
    N_pad = _round_up(N, R)
    feat_p = feat if N_pad == N else jnp.pad(feat, ((0, N_pad - N), (0, 0)))
    M = N_pad // R

    # (N_pad, C) -> (M, R*C): contiguous row-major merge == free bitcast.
    feat_r = feat_p.reshape(M, Cp)

    # Block-diagonal weight (W repeated R times on the diagonal) + tiled bias.
    # Tiny (Cp x Kp); built per call under jit, negligible.
    w_bd = jnp.kron(jnp.eye(R, dtype=weight.dtype), weight).astype(compute_dtype)
    b_t = jnp.tile(bias.astype(jnp.float32), R).reshape(1, Kp)

    # Row tile in packed rows: requested tm points / R, multiple of 8, and
    # clamped so the grid has >= 2 steps whenever possible (v7x megacore).
    tmr_req = max(8, _round_up(max(tm // R, 1), 8))
    half = max(8, _round_up(pl.cdiv(M, 2), 8))
    tmr = min(tmr_req, half)
    grid = (pl.cdiv(M, tmr),)           # partial last block handled by Pallas

    feat_bytes = feat_r.dtype.itemsize
    out_bytes = jnp.dtype(out_dtype).itemsize
    comp_bytes = jnp.dtype(compute_dtype).itemsize
    # VMEM footprint (lane-padded widths), double-buffered tiles + residents.
    Cp_lane = _round_up(Cp, 128)
    Kp_lane = _round_up(Kp, 128)
    tile_vmem = 2 * tmr * (Cp_lane * max(feat_bytes, 4) + Kp_lane * max(out_bytes, 4))
    resident = Cp_lane * Kp_lane * max(comp_bytes, 4) + Kp_lane * 4
    vmem_limit = int(max(tile_vmem + resident + (4 << 20), 32 << 20))

    cost = pl.CostEstimate(
        flops=2 * M * Cp * Kp,
        transcendentals=0,
        bytes_accessed=(M * Cp * feat_bytes           # feat reads (native dtype)
                        + Cp * Kp * comp_bytes        # resident weight
                        + Kp * 4                      # bias
                        + M * Kp * out_bytes))        # logits writes

    out = pl.pallas_call(
        _seg_head_kernel,
        out_shape=jax.ShapeDtypeStruct((M, Kp), out_dtype),
        grid_spec=pltpu.PrefetchScalarGridSpec(
            num_scalar_prefetch=0,
            grid=grid,
            in_specs=[
                pl.BlockSpec((tmr, Cp), lambda i: (i, 0)),   # feat row tile
                pl.BlockSpec((Cp, Kp), lambda i: (0, 0)),    # resident block-diag weight
                pl.BlockSpec((1, Kp), lambda i: (0, 0)),     # resident bias row
            ],
            out_specs=pl.BlockSpec((tmr, Kp), lambda i: (i, 0)),
        ),
        compiler_params=pltpu.CompilerParams(
            dimension_semantics=("parallel",),
            vmem_limit_bytes=vmem_limit,
        ),
        cost_estimate=cost,
    )(feat_r, w_bd, b_t)

    out = out.reshape(N_pad, K)          # free bitcast back to per-point logits
    if N_pad != N:
        out = out[:N]
    return out


class DefaultSegmentorV2:
    """JAX/Pallas port of pointcept DefaultSegmentorV2 (inference forward)."""

    def __init__(self, num_classes, backbone_out_channels, key):
        self.num_classes = num_classes
        self.backbone_out_channels = backbone_out_channels
        if num_classes > 0:
            kw, kb = jax.random.split(key)
            # nn.Linear default init: U(-1/sqrt(fan_in), 1/sqrt(fan_in))
            bound = 1.0 / (backbone_out_channels ** 0.5)
            # stored as (C, K) == torch weight (K, C) transposed
            self.weight = jax.random.uniform(
                kw, (backbone_out_channels, num_classes),
                minval=-bound, maxval=bound, dtype=jnp.float32)
            self.bias = jax.random.uniform(
                kb, (num_classes,), minval=-bound, maxval=bound,
                dtype=jnp.float32)
        else:
            self.weight = None
            self.bias = None

    def _backbone(self, input_dict):
        # TODO(synk): real backbone is config-built; identity pass-through on 'feat'.
        return input_dict["feat"]

    def forward(self, input_dict, *, compute_dtype=jnp.bfloat16,
                out_dtype=jnp.float32):
        feat = self._backbone(input_dict)
        if self.num_classes > 0:
            seg_logits = seg_head_pallas(
                feat, self.weight, self.bias,
                compute_dtype=compute_dtype, out_dtype=out_dtype)
        else:
            seg_logits = feat  # nn.Identity
        # inference path: no 'segment' key -> only logits
        return dict(seg_logits=seg_logits)


if __name__ == "__main__":
    key = jax.random.PRNGKey(0)
    k_model, k_feat, k_feat2 = jax.random.split(key, 3)

    N = 1000                      # multiple of 8: zero-copy packed path
    backbone_out_channels = 32
    num_classes = 16

    model = DefaultSegmentorV2(num_classes, backbone_out_channels, k_model)

    feat = jax.random.normal(k_feat, (N, backbone_out_channels), dtype=jnp.float32)
    input_dict = {"feat": feat}

    # --- default (bf16 compute, f32 accumulate, f32 logits) path ---
    out = model.forward(input_dict)
    seg_logits = jax.block_until_ready(out["seg_logits"])
    assert seg_logits.shape == (N, num_classes)
    assert seg_logits.dtype == jnp.float32

    # reference with the same bf16 rounding of inputs, f32 accumulation
    feat_bf = feat.astype(jnp.bfloat16).astype(jnp.float32)
    w_bf = model.weight.astype(jnp.bfloat16).astype(jnp.float32)
    ref_bf = feat_bf @ w_bf + model.bias
    assert jnp.allclose(seg_logits, ref_bf, atol=1e-3, rtol=1e-3)

    # loosely against the pure-f32 reference (bf16 input rounding error only)
    ref_f32 = feat @ model.weight + model.bias
    assert jnp.allclose(seg_logits, ref_f32, atol=5e-2, rtol=5e-2)

    # --- full f32 compute path (exact check) ---
    out_f32 = model.forward(input_dict, compute_dtype=jnp.float32)
    seg_logits_f32 = jax.block_until_ready(out_f32["seg_logits"])
    assert jnp.allclose(seg_logits_f32, ref_f32, atol=1e-5, rtol=1e-5)

    # --- ragged N (not a multiple of the packing factor): tail pad path ---
    N2 = 203
    feat2 = jax.random.normal(k_feat2, (N2, backbone_out_channels), dtype=jnp.float32)
    out2 = model.forward({"feat": feat2}, compute_dtype=jnp.float32)
    seg2 = jax.block_until_ready(out2["seg_logits"])
    assert seg2.shape == (N2, num_classes)
    ref2 = feat2 @ model.weight + model.bias
    assert jnp.allclose(seg2, ref2, atol=1e-5, rtol=1e-5)

    # --- num_classes = 0 -> identity head ---
    model_id = DefaultSegmentorV2(0, backbone_out_channels, k_model)
    out_id = model_id.forward({"feat": feat})
    assert jax.block_until_ready(out_id["seg_logits"]).shape == feat.shape

    print("KERNEL_OK")
</pallas_src>

<mosaic_0001>
module attributes {stable_mosaic.version = 11 : i64} {
  func.func @_seg_head_kernel(%arg0: i32, %arg1: memref<64x256xf32, #tpu.memory_space<vmem>>, %arg2: memref<256x128xbf16, #tpu.memory_space<vmem>>, %arg3: memref<1x128xf32, #tpu.memory_space<vmem>>, %arg4: memref<64x128xf32, #tpu.memory_space<vmem>>) attributes {dimension_semantics = [#tpu.dimension_semantics<parallel>], iteration_bounds = array<i64: 2>, scalar_prefetch = 0 : i64, scratch_operands = 0 : i64, tpu.core_type = #tpu.core_type<tc>, window_params = [{transform_indices = @transform_0, window_bounds = array<i64: 64, 256>}, {pipeline_mode = #tpu.pipeline_mode<synchronous>, transform_indices = @transform_1, window_bounds = array<i64: 256, 128>}, {pipeline_mode = #tpu.pipeline_mode<synchronous>, transform_indices = @transform_2, window_bounds = array<i64: 1, 128>}, {transform_indices = @transform_3, window_bounds = array<i64: 64, 128>}]} {
    %c0 = arith.constant 0 : index
    %c0_0 = arith.constant 0 : index
    %0 = vector.load %arg1[%c0, %c0_0] : memref<64x256xf32, #tpu.memory_space<vmem>>, vector<64x256xf32>
    %1 = arith.truncf %0 : vector<64x256xf32> to vector<64x256xbf16>
    %c0_1 = arith.constant 0 : index
    %c0_2 = arith.constant 0 : index
    %2 = vector.load %arg2[%c0_1, %c0_2] : memref<256x128xbf16, #tpu.memory_space<vmem>>, vector<256x128xbf16>
    %cst = arith.constant dense<0.000000e+00> : vector<64x128xf32>
    %3 = tpu.matmul %1, %2, %cst {dimension_numbers = #tpu.dot_dimension_numbers<[1], [0], [0], [1], [0, 0, 1, 1], [], []>} : vector<64x256xbf16>, vector<256x128xbf16>, vector<64x128xf32> -> vector<64x128xf32>
    %c0_3 = arith.constant 0 : index
    %c0_4 = arith.constant 0 : index
    %4 = vector.load %arg3[%c0_3, %c0_4] : memref<1x128xf32, #tpu.memory_space<vmem>>, vector<1x128xf32>
    %5 = vector.broadcast %4 : vector<1x128xf32> to vector<64x128xf32>
    %6 = arith.addf %3, %5 : vector<64x128xf32>
    %c0_5 = arith.constant 0 : index
    %c0_6 = arith.constant 0 : index
    %7 = vector.load %arg4[%c0_5, %c0_6] : memref<64x128xf32, #tpu.memory_space<vmem>>, vector<64x128xf32>
    tpu.vector_store %arg4[%c0_5, %c0_6], %6 {strides = array<i32>} : memref<64x128xf32, #tpu.memory_space<vmem>>, vector<64x128xf32>,
    return
  }
  func.func @transform_0(%arg0: i32) -> (i32, i32) {
    %c0_i32 = arith.constant 0 : i32
    %c0_i32_0 = arith.constant 0 : i32
    return %arg0, %c0_i32 : i32, i32
  }
  func.func @transform_1(%arg0: i32) -> (i32, i32) {
    %c0_i32 = arith.constant 0 : i32
    %c0_i32_0 = arith.constant 0 : i32
    %c0_i32_1 = arith.constant 0 : i32
    return %c0_i32, %c0_i32_0 : i32, i32
  }
  func.func @transform_2(%arg0: i32) -> (i32, i32) {
    %c0_i32 = arith.constant 0 : i32
    %c0_i32_0 = arith.constant 0 : i32
    %c0_i32_1 = arith.constant 0 : i32
    return %c0_i32, %c0_i32_0 : i32, i32
  }
  func.func @transform_3(%arg0: i32) -> (i32, i32) {
    %c0_i32 = arith.constant 0 : i32
    %c0_i32_0 = arith.constant 0 : i32
    return %arg0, %c0_i32 : i32, i32
  }
}

</mosaic_0001>

<llo_original>
// kernel: tile.8
$region0: #{tile.8}
  #allocation0 [shape = 's32[1]{0}', space=sflag, size = 0x4, scoped, tag = 'scoped memory for tile.8']
  %s0 = inlined_call_operand.vmem [shape: f32[16], index: 0, kind: input, shape index: {}]
  %s1 = inlined_call_operand.vmem [shape: f32[8,16], index: 1, kind: output, shape index: {}]
  // Predicated region
  $region2: #{tile.8} parent=0 // pred_check
    _
  $region3: #{tile.8} parent=0 // pred_check_branch
    %3 = sbr.rel (0) target = $region5
  $region4: #{tile.8} parent=0 // pred_region
    _
  $region5: #{tile.8} parent=0 // pred_fallthru
    _
  %v4 = vld [vmem:[%s0] ss:$0 sm:$0xff]
  %5 = vst [vmem:[%s1] sm:$0xff] %v4

// kernel: tile.9
$region0: #{tile.9}
  %s0 = inlined_call_operand.vmem [shape: f32[8,16], index: 0, kind: input, shape index: {}]
  %s1 = inlined_call_operand.vmem [shape: f32[1,128], index: 1, kind: output, shape index: {}]
  $region1: #{tile.9} parent=0
    #allocation0 [shape = 'u8[4096]{0}', space=vmem, size = 0x1000, scoped, tag = 'scoped mem for output reshape']
    %v2 = vld [vmem:[%s0] sm:$0x1]
    %vm3 = vcmask 130048
    %4 = vst.msk [vmem:[#allocation0] sm:$0x1] %vm3, %v2
    %s5 = scalar_lea.vmem %s0, 7
    %v6 = vld [vmem:[%s5] sm:$0x1]
    %7 = vrot.lane.b32.xlu0 %v6, 112
    %v8 = vpop.permute.xlu0 %7
    %vm9 = vcmask 1048448
    %10 = vst.msk [vmem:[#allocation0] sm:$0x1] %vm9, %v8
    %s11 = scalar_lea.vmem %s0, 6
    %v12 = vld [vmem:[%s11] sm:$0x1]
    %13 = vrot.lane.b32.xlu0 %v12, 96
    %v14 = vpop.permute.xlu0 %13
    %vm15 = vcmask 917248
    %16 = vst.msk [vmem:[#allocation0] sm:$0x1] %vm15, %v14
    %s17 = scalar_lea.vmem %s0, 5
    %v18 = vld [vmem:[%s17] sm:$0x1]
    %19 = vrot.lane.b32.xlu0 %v18, 80
    %v20 = vpop.permute.xlu0 %19
    %vm21 = vcmask 786048
    %22 = vst.msk [vmem:[#allocation0] sm:$0x1] %vm21, %v20
    %s23 = scalar_lea.vmem %s0, 4
    %v24 = vld [vmem:[%s23] sm:$0x1]
    %25 = vrot.lane.b32.xlu0 %v24, 64
    %v26 = vpop.permute.xlu0 %25
    %vm27 = vcmask 654848
    %28 = vst.msk [vmem:[#allocation0] sm:$0x1] %vm27, %v26
    %s29 = scalar_lea.vmem %s0, 3
    %v30 = vld [vmem:[%s29] sm:$0x1]
    %31 = vrot.lane.b32.xlu0 %v30, 48
    %v32 = vpop.permute.xlu0 %31
    %vm33 = vcmask 523648
    %34 = vst.msk [vmem:[#allocation0] sm:$0x1] %vm33, %v32
    %s35 = scalar_lea.vmem %s0, 2
    %v36 = vld [vmem:[%s35] sm:$0x1]
    %37 = vrot.lane.b32.xlu0 %v36, 32
    %v38 = vpop.permute.xlu0 %37
    %vm39 = vcmask 392448
    %40 = vst.msk [vmem:[#allocation0] sm:$0x1] %vm39, %v38
    %s41 = scalar_lea.vmem %s0, 1
    %v42 = vld [vmem:[%s41] sm:$0x1]
    %43 = vrot.lane.b32.xlu0 %v42, 16
    %v44 = vpop.permute.xlu0 %43
    %vm45 = vcmask 261248
    %46 = vst.msk [vmem:[#allocation0] sm:$0x1] %vm45, %v44
    %s48 = ssub.s32 2, 1
    %v49 = vld [vmem:[#allocation0] sm:%s48]
    %s51 = ssub.s32 2, 1
    %52 = vst [vmem:[%s1] sm:%s51] %v49

// kernel: seg_head_pallas.1
$region0: #{seg_head_pallas.1}
  #allocation0 [shape = 'u32[]', space=smem, size = 0x4, offset = 0x4, fixed_abs, tag = 'smem constant byte address 0x4 - core index']
  #allocation1 [shape = 'u32[72,128]{1,0:T(1,128)}', space=vmem, size = 0x9000, scoped, tag = 'internal scratch']
  %s0 = inlined_call_operand.vmem [shape: f32[125,256], index: 0, kind: input, shape index: {}]
  %s1 = inlined_call_operand.vmem [shape: bf16[256,128], index: 1, kind: input, shape index: {}]
  %s2 = inlined_call_operand.vmem [shape: f32[1,128], index: 2, kind: input, shape index: {}]
  %s3 = inlined_call_operand.vmem [shape: f32[125,128], index: 3, kind: output, shape index: {}]
  %s4 = sld [smem:[#allocation0]]
  $region45: #{seg_head_pallas.1} parent=0
    _
  %s6 = ssub.s32 1, %s4
  %s7 = scalar_select 0, %s6, %s4
  loop: start=0, step=1, limit=4
  $region2: #{seg_head_pallas.1} parent=0 // loop_pre_header
    _
  $region3: #{seg_head_pallas.1} parent=0 // loop_header
    %s9 = sphi 0, %s13
    %p10 = scmp.ge.s32.totalorder %s9, 4
    %s19 = sphi 0, %s21
    %s22 = sphi 0, %s19
    %s23 = sphi 0, %s22
    %s39 = sphi 0, %s23
    %s43 = sphi 0, %s43
    %s45 = sphi 0, %s43
    %s46 = sphi 0, %s45
    %s60 = sphi 0, %s46
    %s64 = sphi 0, %s64
    %s66 = sphi 0, %s64
    %s67 = sphi 0, %s66
    %s81 = sphi 0, %s67
    %s87 = sphi 0, %s89
    %s90 = sphi 0, %s87
    %s91 = sphi 0, %s90
    %s107 = sphi 0, %s91
  $region4: #{seg_head_pallas.1} parent=0 // loop_header_branch
    %12 = sbr.rel (%p10) target = $region8
  $region5: #{seg_head_pallas.1} parent=0 // loop_body
    %s14 = ssub.s32 %s9, 1
    %s15 = ssub.s32 %s9, 2
    %s16 = sadd.s32 %s9, 1
    %s17 = ssub.s32 %s9, %s16
    %p18 = scmp.eq.s32.totalorder %s17, 0
    %s20 = sadd.s32 %s19, 1
    %s21 = scalar_select %p18, %s19, %s20
    %p24 = pneg %p18
    %p25 = scmp.eq.s32.totalorder %s9, 1
    %p26 = por %p24, %p25
    %p27 = scmp.ne.s32.totalorder %s19, %s22
    %p28 = scmp.eq.s32.totalorder %s9, 0
    %p29 = por %p27, %p28
    %p30 = scmp.ne.s32.totalorder %s19, %s22
    %p31 = scmp.eq.s32.totalorder %s14, 1
    %p32 = por %p30, %p31
    %p33 = scmp.ne.s32.totalorder %s22, %s23
    %p34 = scmp.eq.s32.totalorder %s14, 0
    %p35 = por %p33, %p34
    %p36 = scmp.ne.s32.totalorder %s22, %s23
    %p37 = scmp.eq.s32.totalorder %s15, 1
    %p38 = por %p36, %p37
    %p40 = scmp.ne.s32.totalorder %s23, %s39
    %p41 = scmp.eq.s32.totalorder %s15, 0
    %p42 = por %p40, %p41
    %s44 = sadd.s32 %s43, 1
    %p47 = scmp.eq.s32.totalorder %s9, 1
    %p48 = scmp.ne.s32.totalorder %s43, %s45
    %p49 = scmp.eq.s32.totalorder %s9, 0
    %p50 = por %p48, %p49
    %p51 = scmp.ne.s32.totalorder %s43, %s45
    %p52 = scmp.eq.s32.totalorder %s14, 1
    %p53 = por %p51, %p52
    %p54 = scmp.ne.s32.totalorder %s45, %s46
    %p55 = scmp.eq.s32.totalorder %s14, 0
    %p56 = por %p54, %p55
    %p57 = scmp.ne.s32.totalorder %s45, %s46
    %p58 = scmp.eq.s32.totalorder %s15, 1
    %p59 = por %p57, %p58
    %p61 = scmp.ne.s32.totalorder %s46, %s60
    %p62 = scmp.eq.s32.totalorder %s15, 0
    %p63 = por %p61, %p62
    %s65 = sadd.s32 %s64, 1
    %p68 = scmp.eq.s32.totalorder %s9, 1
    %p69 = scmp.ne.s32.totalorder %s64, %s66
    %p70 = scmp.eq.s32.totalorder %s9, 0
    %p71 = por %p69, %p70
    %p72 = scmp.ne.s32.totalorder %s64, %s66
    %p73 = scmp.eq.s32.totalorder %s14, 1
    %p74 = por %p72, %p73
    %p75 = scmp.ne.s32.totalorder %s66, %s67
    %p76 = scmp.eq.s32.totalorder %s14, 0
    %p77 = por %p75, %p76
    %p78 = scmp.ne.s32.totalorder %s66, %s67
    %p79 = scmp.eq.s32.totalorder %s15, 1
    %p80 = por %p78, %p79
    %p82 = scmp.ne.s32.totalorder %s67, %s81
    %p83 = scmp.eq.s32.totalorder %s15, 0
    %p84 = por %p82, %p83
    %s85 = ssub.s32 %s9, %s16
    %p86 = scmp.eq.s32.totalorder %s85, 0
    %s88 = sadd.s32 %s87, 1
    %s89 = scalar_select %p86, %s87, %s88
    %p92 = pneg %p86
    %p93 = scmp.eq.s32.totalorder %s9, 1
    %p94 = por %p92, %p93
    %p95 = scmp.ne.s32.totalorder %s87, %s90
    %p96 = scmp.eq.s32.totalorder %s9, 0
    %p97 = por %p95, %p96
    %p98 = scmp.ne.s32.totalorder %s87, %s90
    %p99 = scmp.eq.s32.totalorder %s14, 1
    %p100 = por %p98, %p99
    %p101 = scmp.ne.s32.totalorder %s90, %s91
    %p102 = scmp.eq.s32.totalorder %s14, 0
    %p103 = por %p101, %p102
    %p104 = scmp.ne.s32.totalorder %s90, %s91
    %p105 = scmp.eq.s32.totalorder %s15, 1
    %p106 = por %p104, %p105
    %p108 = scmp.ne.s32.totalorder %s91, %s107
    %p109 = scmp.eq.s32.totalorder %s15, 0
    %p110 = por %p108, %p109
    %p111 = scmp.le.s32.totalorder 1, %s9
    %p112 = scmp.lt.s32.totalorder %s9, 3
    %p113 = pnand %p111, %p112
    %p114 = pneg %p113
    // Predicated region
    $region9: #{seg_head_pallas.1} parent=5 // pred_check
      _
    $region10: #{seg_head_pallas.1} parent=5 // pred_check_branch
      %116 = sbr.rel (%p113) target = $region12
    $region11: #{seg_head_pallas.1} parent=5 // pred_region
      %s117 = ssub.s32 %s9, 1
      // Predicated region
      $region13: #{seg_head_pallas.1} parent=11 // pred_check
        %p118 = pneg %p56
      $region14: #{seg_head_pallas.1} parent=11 // pred_check_branch
        %120 = sbr.rel (%p118) target = $region16
      $region15: #{seg_head_pallas.1} parent=11 // pred_region
        _
      $region16: #{seg_head_pallas.1} parent=11 // pred_fallthru
        _
      // Predicated region
      $region17: #{seg_head_pallas.1} parent=11 // pred_check
        %p121 = pneg %p77
      $region18: #{seg_head_pallas.1} parent=11 // pred_check_branch
        %123 = sbr.rel (%p121) target = $region20
      $region19: #{seg_head_pallas.1} parent=11 // pred_region
        _
      $region20: #{seg_head_pallas.1} parent=11 // pred_fallthru
        _
    $region12: #{seg_head_pallas.1} parent=5 // pred_fallthru
      _
    %p124 = scmp.lt.s32.totalorder %s9, 2
    // Predicated region
    $region21: #{seg_head_pallas.1} parent=5 // pred_check
      %p125 = pneg %p124
    $region22: #{seg_head_pallas.1} parent=5 // pred_check_branch
      %127 = sbr.rel (%p125) target = $region24
    $region23: #{seg_head_pallas.1} parent=5 // pred_region
      // Predicated region
      $region25: #{seg_head_pallas.1} parent=23 // pred_check
        %p128 = pneg %p29
      $region26: #{seg_head_pallas.1} parent=23 // pred_check_branch
        %130 = sbr.rel (%p128) target = $region28
      $region27: #{seg_head_pallas.1} parent=23 // pred_region
        %s131 = smul.u32 8, %s9
        %p132 = scmp.lt.s32.totalorder %s131, 15
        %s133 = scalar_select %p132, %s131, 15
        %s134 = smul.addr %s133, 2
        %s135 = smul.addr %s134, 8
        %s136 = scalar_lea.vmem %s0, %s135
        %s137 = smul.u32 8, %s9
      $region28: #{seg_head_pallas.1} parent=23 // pred_fallthru
        _
    $region24: #{seg_head_pallas.1} parent=5 // pred_fallthru
      _
    %p138 = scmp.le.s32.totalorder 1, %s9
    %p139 = scmp.lt.s32.totalorder %s9, 3
    %p140 = pnand %p138, %p139
    %p141 = pneg %p140
    // Predicated region
    $region29: #{seg_head_pallas.1} parent=5 // pred_check
      _
    $region30: #{seg_head_pallas.1} parent=5 // pred_check_branch
      %143 = sbr.rel (%p140) target = $region32
    $region31: #{seg_head_pallas.1} parent=5 // pred_region
      %s144 = ssub.s32 %s9, 1
      %s145 = smul.u32 8, %s14
      %p146 = scmp.lt.s32.totalorder %s145, 15
      %s147 = scalar_select %p146, %s145, 15
      %s148 = smul.addr %s147, 2
      %s149 = smul.addr %s148, 8
      %s150 = scalar_lea.vmem %s0, %s149
      %p151 = pneg %p35
      %p152 = pneg %p32
      %p153 = pneg %p56
      %p154 = pneg %p53
      %p155 = pneg %p77
      %p156 = pneg %p74
      %p157 = pneg %p103
      %p158 = pneg %p100
      %s159 = smul.u32 8, %s14
      %p160 = scmp.lt.s32.totalorder %s159, 15
      %s161 = scalar_select %p160, %s159, 15
      %s162 = smul.addr %s161, 8
      %s163 = scalar_lea.vmem %s3, %s162
      %s164 = smul.u32 8, %s14
      %p165 = scmp.lt.s32.totalorder %s164, 15
      %s166 = scalar_select %p165, %s164, 15
      %s167 = smul.addr %s166, 2
      %s168 = smul.addr %s167, 8
      %s169 = scalar_lea.vmem %s0, %s168
      %s170 = smul.u32 8, %s14
      %s171 = smul.u32 8, %s14
      %p172 = scmp.lt.s32.totalorder %s171, 15
      %s173 = scalar_select %p172, %s171, 15
      %s174 = smul.addr %s173, 8
      %s175 = scalar_lea.vmem %s3, %s174
      %s176 = smul.u32 8, %s14
      %v177 = vld [vmem:[%s169] sm:$0xff]
      %v178 = vld [vmem:[%s169 + $0x8] sm:$0xff]
      %v179 = vld [vmem:[%s169 + $0x10] sm:$0xff]
      %v180 = vld [vmem:[%s169 + $0x18] sm:$0xff]
      %v181 = vld [vmem:[%s169 + $0x20] sm:$0xff]
      %v182 = vld [vmem:[%s169 + $0x28] sm:$0xff]
      %v183 = vld [vmem:[%s169 + $0x30] sm:$0xff]
      %v184 = vld [vmem:[%s169 + $0x38] sm:$0xff]
      %v185 = vld [vmem:[%s169 + $0x40] sm:$0xff]
      %v186 = vld [vmem:[%s169 + $0x48] sm:$0xff]
      %v187 = vld [vmem:[%s169 + $0x50] sm:$0xff]
      %v188 = vld [vmem:[%s169 + $0x58] sm:$0xff]
      %v189 = vld [vmem:[%s169 + $0x60] sm:$0xff]
      %v190 = vld [vmem:[%s169 + $0x68] sm:$0xff]
      %v191 = vld [vmem:[%s169 + $0x70] sm:$0xff]
      %v192 = vld [vmem:[%s169 + $0x78] sm:$0xff]
      %v193 = vpack.c.bf16 %v179, %v177
      %v194 = vpack.c.bf16 %v180, %v178
      %v195 = vpack.c.bf16 %v183, %v181
      %v196 = vpack.c.bf16 %v184, %v182
      %v197 = vpack.c.bf16 %v187, %v185
      %v198 = vpack.c.bf16 %v188, %v186
      %v199 = vpack.c.bf16 %v191, %v189
      %v200 = vpack.c.bf16 %v192, %v190
      %v201 = vld [vmem:[%s1] sm:$0xf]
      %v202 = vld [vmem:[%s1 + $0x4] sm:$0xf]
      %v203 = vld [vmem:[%s1 + $0x8] sm:$0xf]
      %v204 = vld [vmem:[%s1 + $0xc] sm:$0xf]
      %v205 = vld [vmem:[%s1 + $0x10] sm:$0xf]
      %v206 = vld [vmem:[%s1 + $0x14] sm:$0xf]
      %v207 = vld [vmem:[%s1 + $0x18] sm:$0xf]
      %v208 = vld [vmem:[%s1 + $0x1c] sm:$0xf]
      %v209 = vld [vmem:[%s1 + $0x20] sm:$0xf]
      %v210 = vld [vmem:[%s1 + $0x24] sm:$0xf]
      %v211 = vld [vmem:[%s1 + $0x28] sm:$0xf]
      %v212 = vld [vmem:[%s1 + $0x2c] sm:$0xf]
      %v213 = vld [vmem:[%s1 + $0x30] sm:$0xf]
      %v214 = vld [vmem:[%s1 + $0x34] sm:$0xf]
      %v215 = vld [vmem:[%s1 + $0x38] sm:$0xf]
      %v216 = vld [vmem:[%s1 + $0x3c] sm:$0xf]
      %v217 = vld [vmem:[%s1 + $0x40] sm:$0xf]
      %v218 = vld [vmem:[%s1 + $0x44] sm:$0xf]
      %v219 = vld [vmem:[%s1 + $0x48] sm:$0xf]
      %v220 = vld [vmem:[%s1 + $0x4c] sm:$0xf]
      %v221 = vld [vmem:[%s1 + $0x50] sm:$0xf]
      %v222 = vld [vmem:[%s1 + $0x54] sm:$0xf]
      %v223 = vld [vmem:[%s1 + $0x58] sm:$0xf]
      %v224 = vld [vmem:[%s1 + $0x5c] sm:$0xf]
      %v225 = vld [vmem:[%s1 + $0x60] sm:$0xf]
      %v226 = vld [vmem:[%s1 + $0x64] sm:$0xf]
      %v227 = vld [vmem:[%s1 + $0x68] sm:$0xf]
      %v228 = vld [vmem:[%s1 + $0x6c] sm:$0xf]
      %v229 = vld [vmem:[%s1 + $0x70] sm:$0xf]
      %v230 = vld [vmem:[%s1 + $0x74] sm:$0xf]
      %v231 = vld [vmem:[%s1 + $0x78] sm:$0xf]
      %v232 = vld [vmem:[%s1 + $0x7c] sm:$0xf]
      %v233 = vld [vmem:[%s2] sm:$0x1]
      %v235 = vperm.slane %v233, 0
      %v269 = vunpack.c.l.b16 %v201
      %v270 = vunpack.c.l.b16 %v202
      %v271 = vunpack.c.l.b16 %v203
      %v272 = vunpack.c.l.b16 %v204
      %v273 = vunpack.c.l.b16 %v205
      %v274 = vunpack.c.l.b16 %v206
      %v275 = vunpack.c.l.b16 %v207
      %v276 = vunpack.c.l.b16 %v208
      %v277 = vunpack.c.l.b16 %v209
      %v278 = vunpack.c.l.b16 %v210
      %v279 = vunpack.c.l.b16 %v211
      %v280 = vunpack.c.l.b16 %v212
      %v281 = vunpack.c.l.b16 %v213
      %v282 = vunpack.c.l.b16 %v214
      %v283 = vunpack.c.l.b16 %v215
      %v284 = vunpack.c.l.b16 %v216
      %v285 = vunpack.c.l.b16 %v217
      %v286 = vunpack.c.l.b16 %v218
      %v287 = vunpack.c.l.b16 %v219
      %v288 = vunpack.c.l.b16 %v220
      %v289 = vunpack.c.l.b16 %v221
      %v290 = vunpack.c.l.b16 %v222
      %v291 = vunpack.c.l.b16 %v223
      %v292 = vunpack.c.l.b16 %v224
      %v293 = vunpack.c.l.b16 %v225
      %v294 = vunpack.c.l.b16 %v226
      %v295 = vunpack.c.l.b16 %v227
      %v296 = vunpack.c.l.b16 %v228
      %v297 = vunpack.c.l.b16 %v229
      %v298 = vunpack.c.l.b16 %v230
      %v299 = vunpack.c.l.b16 %v231
      %v300 = vunpack.c.l.b16 %v232
      %v301 = vpack.c.b16 %v270, %v269
      %v302 = vpack.c.b16 %v272, %v271
      %v303 = vpack.c.b16 %v274, %v273
      %v304 = vpack.c.b16 %v276, %v275
      %v305 = vpack.c.b16 %v278, %v277
      %v306 = vpack.c.b16 %v280, %v279
      %v307 = vpack.c.b16 %v282, %v281
      %v308 = vpack.c.b16 %v284, %v283
      %v309 = vpack.c.b16 %v286, %v285
      %v310 = vpack.c.b16 %v288, %v287
      %v311 = vpack.c.b16 %v290, %v289
      %v312 = vpack.c.b16 %v292, %v291
      %v313 = vpack.c.b16 %v294, %v293
      %v314 = vpack.c.b16 %v296, %v295
      %v315 = vpack.c.b16 %v298, %v297
      %v316 = vpack.c.b16 %v300, %v299
      %333 = vmatpush.bf16.msra.mxu0 %v308
      %334 = vmatpush.bf16.msra.mxu0 %v307
      %335 = vmatpush.bf16.msra.mxu0 %v306
      %336 = vmatpush.bf16.msra.mxu0 %v305
      %337 = vmatpush.bf16.msra.mxu0 %v304
      %338 = vmatpush.bf16.msra.mxu0 %v303
      %339 = vmatpush.bf16.msra.mxu0 %v302
      %340 = vmatpush.bf16.msra.mxu0 %v301
      %341 = vmatmul.bf16.gmra.mxu0 %v193
      %v342 = vpop.f32.mrf.mxu0
      %v343 = vadd.f32 %v235, %v342
      %v344 = vpop.f32.mrf.mxu0
      %v345 = vadd.f32 %v235, %v344
      %346 = vmatmul.bf16.gmra.mxu0 %v195
      %v347 = vpop.f32.mrf.mxu0
      %v348 = vadd.f32 %v235, %v347
      %v349 = vpop.f32.mrf.mxu0
      %v350 = vadd.f32 %v235, %v349
      %351 = vmatmul.bf16.gmra.mxu0 %v197
      %v352 = vpop.f32.mrf.mxu0
      %v353 = vadd.f32 %v235, %v352
      %v354 = vpop.f32.mrf.mxu0
      %v355 = vadd.f32 %v235, %v354
      %356 = vmatmul.bf16.gmra.mxu0 %v199
      %v357 = vpop.f32.mrf.mxu0
      %v358 = vadd.f32 %v235, %v357
      %v359 = vpop.f32.mrf.mxu0
      %v360 = vadd.f32 %v235, %v359
      %361 = vdwg.mxu0
      %362 = vmatpush.bf16.msra.mxu0 %v316
      %363 = vmatpush.bf16.msra.mxu0 %v315
      %364 = vmatpush.bf16.msra.mxu0 %v314
      %365 = vmatpush.bf16.msra.mxu0 %v313
      %366 = vmatpush.bf16.msra.mxu0 %v312
      %367 = vmatpush.bf16.msra.mxu0 %v311
      %368 = vmatpush.bf16.msra.mxu0 %v310
      %369 = vmatpush.bf16.msra.mxu0 %v309
      %370 = vmatmul.bf16.gmra.mxu0 %v194
      %v371 = vpop.f32.mrf.mxu0
      %v372 = vadd.f32 %v343, %v371
      %v373 = vpop.f32.mrf.mxu0
      %v374 = vadd.f32 %v345, %v373
      %375 = vmatmul.bf16.gmra.mxu0 %v196
      %v376 = vpop.f32.mrf.mxu0
      %v377 = vadd.f32 %v348, %v376
      %v378 = vpop.f32.mrf.mxu0
      %v379 = vadd.f32 %v350, %v378
      %380 = vmatmul.bf16.gmra.mxu0 %v198
      %v381 = vpop.f32.mrf.mxu0
      %v382 = vadd.f32 %v353, %v381
      %v383 = vpop.f32.mrf.mxu0
      %v384 = vadd.f32 %v355, %v383
      %385 = vmatmul.bf16.gmra.mxu0 %v200
      %v386 = vpop.f32.mrf.mxu0
      %v387 = vadd.f32 %v358, %v386
      %v388 = vpop.f32.mrf.mxu0
      %v389 = vadd.f32 %v360, %v388
      %390 = vdwg.mxu0
      %391 = vst [vmem:[%s175] sm:$0xff] %v372
      %392 = vst [vmem:[%s175 + $0x8] sm:$0xff] %v374
      %393 = vst [vmem:[%s175 + $0x10] sm:$0xff] %v377
      %394 = vst [vmem:[%s175 + $0x18] sm:$0xff] %v379
      %395 = vst [vmem:[%s175 + $0x20] sm:$0xff] %v382
      %396 = vst [vmem:[%s175 + $0x28] sm:$0xff] %v384
      %397 = vst [vmem:[%s175 + $0x30] sm:$0xff] %v387
      %398 = vst [vmem:[%s175 + $0x38] sm:$0xff] %v389
      %s399 = smul.u32 8, %s14
      %p400 = scmp.lt.s32.totalorder %s399, 15
      %s401 = scalar_select %p400, %s399, 15
      %s402 = smul.addr %s401, 8
      %s403 = scalar_lea.vmem %s3, %s402
      // Predicated region
      $region33: #{seg_head_pallas.1} parent=31 // pred_check
        %p404 = pneg %p100
      $region34: #{seg_head_pallas.1} parent=31 // pred_check_branch
        %406 = sbr.rel (%p404) target = $region36
      $region35: #{seg_head_pallas.1} parent=31 // pred_region
        %s407 = smul.u32 8, %s14
      $region36: #{seg_head_pallas.1} parent=31 // pred_fallthru
        _
    $region32: #{seg_head_pallas.1} parent=5 // pred_fallthru
      _
    %p408 = scmp.le.s32.totalorder 2, %s9
    // Predicated region
    $region37: #{seg_head_pallas.1} parent=5 // pred_check
      %p409 = pneg %p408
    $region38: #{seg_head_pallas.1} parent=5 // pred_check_branch
      %411 = sbr.rel (%p409) target = $region40
    $region39: #{seg_head_pallas.1} parent=5 // pred_region
      %s412 = ssub.s32 %s9, 2
      // Predicated region
      $region41: #{seg_head_pallas.1} parent=39 // pred_check
        %p413 = pneg %p106
      $region42: #{seg_head_pallas.1} parent=39 // pred_check_branch
        %415 = sbr.rel (%p413) target = $region44
      $region43: #{seg_head_pallas.1} parent=39 // pred_region
        %s416 = smul.u32 8, %s15
        %p417 = scmp.lt.s32.totalorder %s416, 15
        %s418 = scalar_select %p417, %s416, 15
        %s419 = smul.addr %s418, 8
        %s420 = scalar_lea.vmem %s3, %s419
      $region44: #{seg_head_pallas.1} parent=39 // pred_fallthru
        _
    $region40: #{seg_head_pallas.1} parent=5 // pred_fallthru
      _
  $region6: #{seg_head_pallas.1} parent=0 // loop_footer
    %s13 = sadd.s32 1, %s9
  $region7: #{seg_head_pallas.1} parent=0 // loop_footer_branch
    %8 = sbr.rel target = $region3
  $region8: #{seg_head_pallas.1} parent=0 // loop_exit
    _

</llo_original>
